<compile_context>
chip_gen: v7x
topology: tpu7x:2x2x1
jax: 0.10.0
libtpu: 0.0.40
codegen_flags: <defaults>
</compile_context>

<pallas_src>
import jax
import jax.numpy as jnp
from jax.experimental import pallas as pl
from jax.experimental.pallas import tpu as pltpu


def _round_up(x, m):
    return (x + m - 1) // m * m


def _conv_block_kernel(w_ref, x_ref, o_ref):
    """out = relu(W @ X); bias already folded into W/X.

    w_ref: (Cout_pad, K_pad)  bf16 weights, columns = (kh,kw,cin) + bias col + pad
    x_ref: (K_pad, tm)        bf16 im2col patches (ones row for bias, zero pad rows)
    o_ref: (Cout_pad, tm)     network dtype
    """
    acc = jnp.dot(w_ref[...], x_ref[...], preferred_element_type=jnp.float32)
    o_ref[...] = jnp.maximum(acc, 0.0).astype(o_ref.dtype)


def conv2d_block(x_nchw, weight_oihw, bias, *, stride=1, padding=1,
                 target_rows=4096):
    """Forward of Conv2dBlock: ZeroPad2d(padding) -> Conv2d(stride, bias) -> ReLU."""
    N, Cin, H, W = x_nchw.shape
    Cout, Cin_w, KH, KW = weight_oihw.shape
    assert Cin == Cin_w

    out_dtype = x_nchw.dtype
    compute_dtype = jnp.bfloat16

    # ---- wrapper-side layout plumbing (cheap XLA ops; the kernel only sees a
    #      single lane-dense matmul).
    x = jnp.transpose(x_nchw, (0, 2, 3, 1))                       # NCHW -> NHWC
    x = jnp.pad(x, ((0, 0), (padding, padding), (padding, padding), (0, 0)))
    Hp, Wp = H + 2 * padding, W + 2 * padding
    Hout = (Hp - KH) // stride + 1
    Wout = (Wp - KW) // stride + 1

    M = N * Hout * Wout
    K = KH * KW * Cin
    K_pad = _round_up(K + 1, 8)          # +1 row for the folded bias; sublane axis
    Cout_pad = _round_up(Cout, 8)        # sublane axis of the output block

    # M tile: ~target_rows, multiple of 128 (lane-dense output); when the grid
    # has more than one step, keep the tile count even so v7x's two TCs both
    # get work from the "parallel" M axis.
    n_tiles = pl.cdiv(M, target_rows)
    if n_tiles > 1 and n_tiles % 2:
        n_tiles += 1
    tm = _round_up(pl.cdiv(M, n_tiles), 128)
    M_pad = _round_up(M, tm)
    grid_m = M_pad // tm

    # Transposed im2col, built padded in a single concatenate:
    #   rows 0..K-1 : taps in (kh, kw, cin) order; columns in (n, hout, wout) order
    #   row  K      : 1.0 (bias)
    #   rows K+1..  : 0.0 (sublane pad)
    x = x.astype(compute_dtype)
    rows = []
    for kh in range(KH):
        for kw in range(KW):
            tap = x[:, kh:kh + (Hout - 1) * stride + 1:stride,
                      kw:kw + (Wout - 1) * stride + 1:stride, :]   # (N,Hout,Wout,Cin)
            rows.append(jnp.transpose(tap, (3, 0, 1, 2)).reshape(Cin, M))
    rows.append(jnp.ones((1, M), compute_dtype))
    rows.append(jnp.zeros((K_pad - K - 1, M), compute_dtype))
    lhs = jnp.concatenate(rows, axis=0)                            # (K_pad, M)
    if M_pad > M:
        lhs = jnp.pad(lhs, ((0, 0), (0, M_pad - M)))

    # Weights (Cout, K) in the same (kh, kw, cin) order; bias in column K.
    w = jnp.transpose(weight_oihw, (0, 2, 3, 1)).reshape(Cout, K)
    w = jnp.concatenate(
        [w.astype(compute_dtype),
         bias.astype(compute_dtype).reshape(Cout, 1),
         jnp.zeros((Cout, K_pad - K - 1), compute_dtype)], axis=1)  # (Cout, K_pad)
    if Cout_pad > Cout:
        w = jnp.pad(w, ((0, Cout_pad - Cout), (0, 0)))

    out = pl.pallas_call(
        _conv_block_kernel,
        out_shape=jax.ShapeDtypeStruct((Cout_pad, M_pad), out_dtype),
        grid=(grid_m,),
        in_specs=[
            pl.BlockSpec((Cout_pad, K_pad), lambda i: (0, 0)),   # weights, resident
            pl.BlockSpec((K_pad, tm), lambda i: (0, i)),         # im2col tile
        ],
        out_specs=pl.BlockSpec((Cout_pad, tm), lambda i: (0, i)),
        compiler_params=pltpu.CompilerParams(
            dimension_semantics=("parallel",)),
    )(w, lhs)

    # Strip padding; back to PyTorch's NCHW convention.
    out = out[:Cout, :M].reshape(Cout, N, Hout, Wout)
    return jnp.transpose(out, (1, 0, 2, 3))


if __name__ == "__main__":
    # Small shapes consistent with the module: N=2, Cin=4, Cout=8, 16x16 spatial,
    # kernel_size=3, stride=1, padding=1 (zero pad), norm='none', activation='relu'.
    N, Cin, Cout, H, W = 2, 4, 8, 16, 16
    KH = KW = 3
    stride, padding = 1, 1

    key = jax.random.PRNGKey(0)
    kx, kw_, kb = jax.random.split(key, 3)

    x = jax.random.normal(kx, (N, Cin, H, W), dtype=jnp.float32)

    # Deterministic parameter init (PyTorch Conv2d-style uniform(-1/sqrt(fan_in), +)).
    fan_in = Cin * KH * KW
    bound = 1.0 / (fan_in ** 0.5)
    weight = jax.random.uniform(kw_, (Cout, Cin, KH, KW), jnp.float32, -bound, bound)
    bias = jax.random.uniform(kb, (Cout,), jnp.float32, -bound, bound)

    out = conv2d_block(x, weight, bias, stride=stride, padding=padding)
    out = jax.block_until_ready(out)

    # Reference check against XLA's conv (same NCHW semantics as PyTorch).
    # Tolerance loosened vs. pure-f32 GEMM because the kernel uses bf16 MXU operands.
    ref = jax.lax.conv_general_dilated(
        x, weight, window_strides=(stride, stride),
        padding=[(padding, padding), (padding, padding)],
        dimension_numbers=("NCHW", "OIHW", "NCHW"))
    ref = jnp.maximum(ref + bias[None, :, None, None], 0.0)

    assert out.shape == (N, Cout, H, W), out.shape
    err = float(jnp.max(jnp.abs(out.astype(jnp.float32) - ref)))
    assert err < 5e-2, err
    print("KERNEL_OK")
</pallas_src>

<mosaic_0001>
module attributes {stable_mosaic.version = 11 : i64} {
  func.func @_conv_block_kernel(%arg0: i32, %arg1: memref<8x40xbf16, #tpu.memory_space<vmem>>, %arg2: memref<40x512xbf16, #tpu.memory_space<vmem>>, %arg3: memref<8x512xf32, #tpu.memory_space<vmem>>) attributes {dimension_semantics = [#tpu.dimension_semantics<parallel>], iteration_bounds = array<i64: 1>, scalar_prefetch = 0 : i64, scratch_operands = 0 : i64, tpu.core_type = #tpu.core_type<tc>, window_params = [{pipeline_mode = #tpu.pipeline_mode<synchronous>, transform_indices = @transform_0, window_bounds = array<i64: 8, 40>}, {transform_indices = @transform_1, window_bounds = array<i64: 40, 512>}, {transform_indices = @transform_2, window_bounds = array<i64: 8, 512>}]} {
    %c0 = arith.constant 0 : index
    %c0_0 = arith.constant 0 : index
    %0 = vector.load %arg1[%c0, %c0_0] : memref<8x40xbf16, #tpu.memory_space<vmem>>, vector<8x40xbf16>
    %c0_1 = arith.constant 0 : index
    %c0_2 = arith.constant 0 : index
    %1 = vector.load %arg2[%c0_1, %c0_2] : memref<40x512xbf16, #tpu.memory_space<vmem>>, vector<40x512xbf16>
    %cst = arith.constant dense<0.000000e+00> : vector<8x512xf32>
    %2 = tpu.matmul %0, %1, %cst {dimension_numbers = #tpu.dot_dimension_numbers<[1], [0], [0], [1], [0, 0, 1, 1], [], []>} : vector<8x40xbf16>, vector<40x512xbf16>, vector<8x512xf32> -> vector<8x512xf32>
    %cst_3 = arith.constant 0.000000e+00 : f32
    %3 = vector.broadcast %cst_3 : f32 to vector<8x512xf32>
    %4 = arith.maximumf %2, %3 : vector<8x512xf32>
    %c0_4 = arith.constant 0 : index
    %c0_5 = arith.constant 0 : index
    %5 = vector.load %arg3[%c0_4, %c0_5] : memref<8x512xf32, #tpu.memory_space<vmem>>, vector<8x512xf32>
    tpu.vector_store %arg3[%c0_4, %c0_5], %4 {strides = array<i32>} : memref<8x512xf32, #tpu.memory_space<vmem>>, vector<8x512xf32>,
    return
  }
  func.func @transform_0(%arg0: i32) -> (i32, i32) {
    %c0_i32 = arith.constant 0 : i32
    %c0_i32_0 = arith.constant 0 : i32
    %c0_i32_1 = arith.constant 0 : i32
    return %c0_i32, %c0_i32_0 : i32, i32
  }
  func.func @transform_1(%arg0: i32) -> (i32, i32) {
    %c0_i32 = arith.constant 0 : i32
    %c0_i32_0 = arith.constant 0 : i32
    return %c0_i32, %arg0 : i32, i32
  }
  func.func @transform_2(%arg0: i32) -> (i32, i32) {
    %c0_i32 = arith.constant 0 : i32
    %c0_i32_0 = arith.constant 0 : i32
    return %c0_i32, %arg0 : i32, i32
  }
}

</mosaic_0001>

<llo_original>
// kernel: tpu_custom_call.1
$region0: #{tpu_custom_call.1}
  #allocation0 [shape = 'u32[]', space=smem, size = 0x4, offset = 0x4, fixed_abs, tag = 'smem constant byte address 0x4 - core index']
  #allocation1 [shape = 'u32[144,128]{1,0:T(1,128)}', space=vmem, size = 0x12000, scoped, tag = 'internal scratch']
  %s0 = inlined_call_operand.hbm [shape: bf16[8,40], index: 0, kind: input, shape index: {}]
  %s1 = inlined_call_operand.hbm [shape: bf16[40,512], index: 1, kind: input, shape index: {}]
  %s2 = inlined_call_operand.hbm [shape: f32[8,512], index: 2, kind: output, shape index: {}]
  %s3 = sld [smem:[#allocation0]]
  $region26: #{tpu_custom_call.1} parent=0
    _
  %s5 = ssub.s32 1, %s3
  %s6 = scalar_select 0, %s5, %s3
  $region1: #{tpu_custom_call.1} parent=0
    #allocation2 [shape = 'u8[2048]{0}', space=vmem, size = 0x800, scoped, tag = 'input window, operand 0, single buffered']
    #allocation3 [shape = 's32[1]{0}', space=sflag, size = 0x4, scoped, tag = 'scoped memory for tpu_custom_call.1']
    #allocation4 [shape = 's32[1]{0}', space=sflag, size = 0x4, scoped, tag = 'scoped memory for tpu_custom_call.1']
    #allocation5 [shape = 'u8[40960]{0}', space=vmem, size = 0xa000, scoped, tag = 'input window, operand 1, single buffered']
    #allocation6 [shape = 's32[1]{0}', space=sflag, size = 0x4, scoped, tag = 'scoped memory for tpu_custom_call.1']
    #allocation7 [shape = 'u8[16384]{0}', space=vmem, size = 0x4000, scoped, tag = 'output window, operand 0, single buffered']
    %7 = vsyncpa [#allocation3], 0
    %8 = vsyncpa [#allocation6], 0
    %9 = vsyncpa [#allocation4], 0
    // Predicated region
    $region2: #{tpu_custom_call.1} parent=1 // pred_check
      _
    $region3: #{tpu_custom_call.1} parent=1 // pred_check_branch
      %11 = sbr.rel (0) target = $region5
    $region4: #{tpu_custom_call.1} parent=1 // pred_region
      %s13 = ssub.s32 64, 64
      %14 = vsyncadd [#allocation3], %s13
      %s16 = sshll.u32 [#allocation2], 4
      %s17 = int_to_ptr.vmem [resolvable:$true] %s16
      %19 = dma.hbm_to_vmem [thread:$0]  %s0, 64, %s17, [#allocation3]
    $region5: #{tpu_custom_call.1} parent=1 // pred_fallthru
      _
    // Predicated region
    $region6: #{tpu_custom_call.1} parent=1 // pred_check
      _
    $region7: #{tpu_custom_call.1} parent=1 // pred_check_branch
      %21 = sbr.rel (0) target = $region9
    $region8: #{tpu_custom_call.1} parent=1 // pred_region
      %s23 = ssub.s32 1280, 1280
      %24 = vsyncadd [#allocation6], %s23
      %s25 = sshll.u32 [#allocation5], 4
      %s26 = int_to_ptr.vmem [resolvable:$true] %s25
      %31 = dma.hbm_to_vmem [thread:$0]  %s1, 1280, %s26, [#allocation6], 256, 256, 16
    $region9: #{tpu_custom_call.1} parent=1 // pred_fallthru
      _
    // Predicated region
    $region10: #{tpu_custom_call.1} parent=1 // pred_check
      _
    $region11: #{tpu_custom_call.1} parent=1 // pred_check_branch
      %33 = sbr.rel (0) target = $region13
    $region12: #{tpu_custom_call.1} parent=1 // pred_region
      %34 = dma.done [#allocation3], 64
    $region13: #{tpu_custom_call.1} parent=1 // pred_fallthru
      _
    // Predicated region
    $region14: #{tpu_custom_call.1} parent=1 // pred_check
      _
    $region15: #{tpu_custom_call.1} parent=1 // pred_check_branch
      %36 = sbr.rel (0) target = $region17
    $region16: #{tpu_custom_call.1} parent=1 // pred_region
      %37 = dma.done [#allocation6], 1280
    $region17: #{tpu_custom_call.1} parent=1 // pred_fallthru
      _
    %v39 = vld [vmem:[#allocation2] sm:$0xf]
    %v40 = vld [vmem:[#allocation5] sm:$0xff]
    %v41 = vld [vmem:[#allocation5 + $0x8] sm:$0xff]
    %v42 = vld [vmem:[#allocation5 + $0x10] sm:$0xff]
    %v43 = vld [vmem:[#allocation5 + $0x18] sm:$0xff]
    %v44 = vld [vmem:[#allocation5 + $0x20] sm:$0xff]
    %v45 = vld [vmem:[#allocation5 + $0x28] sm:$0xff]
    %v46 = vld [vmem:[#allocation5 + $0x30] sm:$0xff]
    %v47 = vld [vmem:[#allocation5 + $0x38] sm:$0xff]
    %v48 = vld [vmem:[#allocation5 + $0x40] sm:$0xff]
    %v49 = vld [vmem:[#allocation5 + $0x48] sm:$0xff]
    %v60 = vunpack.c.l.b16 %v40
    %v61 = vunpack.c.h.b16 %v40
    %v62 = vunpack.c.l.b16 %v41
    %v63 = vunpack.c.h.b16 %v41
    %v64 = vunpack.c.l.b16 %v42
    %v65 = vunpack.c.h.b16 %v42
    %v66 = vunpack.c.l.b16 %v43
    %v67 = vunpack.c.h.b16 %v43
    %v68 = vunpack.c.l.b16 %v44
    %v69 = vunpack.c.h.b16 %v44
    %v70 = vunpack.c.l.b16 %v45
    %v71 = vunpack.c.h.b16 %v45
    %v72 = vunpack.c.l.b16 %v46
    %v73 = vunpack.c.h.b16 %v46
    %v74 = vunpack.c.l.b16 %v47
    %v75 = vunpack.c.h.b16 %v47
    %v76 = vunpack.c.l.b16 %v48
    %v77 = vunpack.c.h.b16 %v48
    %v78 = vunpack.c.l.b16 %v49
    %v79 = vunpack.c.h.b16 %v49
    %v80 = vpack.c.b16 %v64, %v60
    %v81 = vpack.c.b16 %v65, %v61
    %v82 = vpack.c.b16 %v66, %v62
    %v83 = vpack.c.b16 %v67, %v63
    %v84 = vpack.c.b16 %v72, %v68
    %v85 = vpack.c.b16 %v73, %v69
    %v86 = vpack.c.b16 %v74, %v70
    %v87 = vpack.c.b16 %v75, %v71
    %v88 = vpack.c.b16 %v76, %v76
    %v89 = vpack.c.b16 %v77, %v77
    %v90 = vpack.c.b16 %v78, %v78
    %v91 = vpack.c.b16 %v79, %v79
    %vm100 = vcmask 326656
    %v102 = vsel %vm100, %v39, 0
    %vm104 = vcmask 1043456
    %v106 = vsel %vm104, %v88, 0
    %v109 = vsel %vm104, %v89, 0
    %v112 = vsel %vm104, %v90, 0
    %v115 = vsel %vm104, %v91, 0
    %117 = vmatprep.subr.bf16.mxu0 %v81
    %118 = vmatpush1.bf16.msra.mxu0 %v80
    %119 = vmatprep.subr.bf16.mxu0 %v85
    %120 = vmatpush1.bf16.msra.mxu0 %v84
    %121 = vmatprep.subr.bf16.mxu0 %v109
    %122 = vmatpush1.bf16.msra.mxu0 %v106
    %123 = vmatprep.subr.bf16.mxu0 0
    %124 = vmatpush1.bf16.msra.mxu0 0
    %125 = vmatprep.subr.bf16.mxu0 0
    %126 = vmatpush1.bf16.msra.mxu0 0
    %127 = vmatprep.subr.bf16.mxu0 0
    %128 = vmatpush1.bf16.msra.mxu0 0
    %129 = vmatprep.subr.bf16.mxu0 0
    %130 = vmatpush1.bf16.msra.mxu0 0
    %131 = vmatprep.subr.bf16.mxu0 0
    %132 = vmatpush1.bf16.msra.mxu0 0
    %133 = vmatprep.subr.bf16.mxu0 0
    %134 = vmatpush1.bf16.msra.mxu0 0
    %135 = vmatprep.subr.bf16.mxu0 0
    %136 = vmatpush1.bf16.msra.mxu0 0
    %137 = vmatprep.subr.bf16.mxu0 0
    %138 = vmatpush1.bf16.msra.mxu0 0
    %139 = vmatprep.subr.bf16.mxu0 0
    %140 = vmatpush1.bf16.msra.mxu0 0
    %141 = vmatprep.subr.bf16.mxu0 0
    %142 = vmatpush1.bf16.msra.mxu0 0
    %143 = vmatprep.subr.bf16.mxu0 0
    %144 = vmatpush1.bf16.msra.mxu0 0
    %145 = vmatprep.subr.bf16.mxu0 0
    %146 = vmatpush1.bf16.msra.mxu0 0
    %147 = vmatprep.subr.bf16.mxu0 0
    %148 = vmatpush1.bf16.msra.mxu0 0
    %149 = vmatprep.mubr.bf16.mxu0 0
    %150 = vmatmul.mubr.bf16.gmra.mrb[0].mxu0 %v102
    %v151 = vpop.f32.mrb[0].mxu0
    %v152 = vadd.f32 0.0, %v151
    %v153 = vpop.f32.mrb[0].mxu0
    %v154 = vadd.f32 0.0, %v153
    %v155 = vpop.f32.mrb[0].mxu0
    %v156 = vpop.f32.mrb[0].mxu0
    %157 = vdwg.mxu0
    %158 = vmatprep.subr.bf16.mxu0 %v83
    %159 = vmatpush1.bf16.msra.mxu0 %v82
    %160 = vmatprep.subr.bf16.mxu0 %v87
    %161 = vmatpush1.bf16.msra.mxu0 %v86
    %162 = vmatprep.subr.bf16.mxu0 %v115
    %163 = vmatpush1.bf16.msra.mxu0 %v112
    %164 = vmatprep.subr.bf16.mxu0 0
    %165 = vmatpush1.bf16.msra.mxu0 0
    %166 = vmatprep.subr.bf16.mxu0 0
    %167 = vmatpush1.bf16.msra.mxu0 0
    %168 = vmatprep.subr.bf16.mxu0 0
    %169 = vmatpush1.bf16.msra.mxu0 0
    %170 = vmatprep.subr.bf16.mxu0 0
    %171 = vmatpush1.bf16.msra.mxu0 0
    %172 = vmatprep.subr.bf16.mxu0 0
    %173 = vmatpush1.bf16.msra.mxu0 0
    %174 = vmatprep.subr.bf16.mxu0 0
    %175 = vmatpush1.bf16.msra.mxu0 0
    %176 = vmatprep.subr.bf16.mxu0 0
    %177 = vmatpush1.bf16.msra.mxu0 0
    %178 = vmatprep.subr.bf16.mxu0 0
    %179 = vmatpush1.bf16.msra.mxu0 0
    %180 = vmatprep.subr.bf16.mxu0 0
    %181 = vmatpush1.bf16.msra.mxu0 0
    %182 = vmatprep.subr.bf16.mxu0 0
    %183 = vmatpush1.bf16.msra.mxu0 0
    %184 = vmatprep.subr.bf16.mxu0 0
    %185 = vmatpush1.bf16.msra.mxu0 0
    %186 = vmatprep.subr.bf16.mxu0 0
    %187 = vmatpush1.bf16.msra.mxu0 0
    %188 = vmatprep.subr.bf16.mxu0 0
    %189 = vmatpush1.bf16.msra.mxu0 0
    %190 = vmatprep.mubr.bf16.mxu0 0
    %191 = vmatmul.mubr.bf16.gmra.mrb[0].mxu0 %v102
    %v192 = vpop.f32.mrb[0].mxu0
    %v193 = vadd.f32 0.0, %v192
    %v194 = vpop.f32.mrb[0].mxu0
    %v195 = vadd.f32 0.0, %v194
    %v196 = vpop.f32.mrb[0].mxu0
    %v197 = vpop.f32.mrb[0].mxu0
    %198 = vdwg.mxu0
    %v199 = vmax.f32 %v152, 0.0
    %v200 = vmax.f32 %v154, 0.0
    %v201 = vmax.f32 %v193, 0.0
    %v202 = vmax.f32 %v195, 0.0
    %203 = vst [vmem:[#allocation7] sm:$0xff] %v199
    %204 = vst [vmem:[#allocation7 + $0x8] sm:$0xff] %v200
    %205 = vst [vmem:[#allocation7 + $0x10] sm:$0xff] %v201
    %206 = vst [vmem:[#allocation7 + $0x18] sm:$0xff] %v202
    // Predicated region
    $region18: #{tpu_custom_call.1} parent=1 // pred_check
      _
    $region19: #{tpu_custom_call.1} parent=1 // pred_check_branch
      %208 = sbr.rel (0) target = $region21
    $region20: #{tpu_custom_call.1} parent=1 // pred_region
      %s210 = ssub.s32 512, 512
      %211 = vsyncadd [#allocation4], %s210
      %s213 = sshll.u32 [#allocation7], 4
      %s214 = int_to_ptr.vmem [resolvable:$true] %s213
      %216 = dma.vmem_to_hbm [thread:$0]  %s214, 512, %s2, [#allocation4]
    $region21: #{tpu_custom_call.1} parent=1 // pred_fallthru
      _
    // Predicated region
    $region22: #{tpu_custom_call.1} parent=1 // pred_check
      _
    $region23: #{tpu_custom_call.1} parent=1 // pred_check_branch
      %218 = sbr.rel (0) target = $region25
    $region24: #{tpu_custom_call.1} parent=1 // pred_region
      %219 = dma.done [#allocation4], 512
    $region25: #{tpu_custom_call.1} parent=1 // pred_fallthru
      _
    %220 = vsyncpa [#allocation3], 1
    %221 = vsyncpa [#allocation6], 1
    %222 = vsyncpa [#allocation4], 1

</llo_original>
